<compile_context>
chip_gen: v7x
topology: tpu7x:2x2x1
jax: 0.10.0
libtpu: 0.0.40
codegen_flags: <defaults>
</compile_context>

<pallas_src>
import jax
import jax.numpy as jnp
from jax import lax
from jax.experimental import pallas as pl
from jax.experimental.pallas import tpu as pltpu


# ---------------------------------------------------------------------------
# Fused Pallas kernel: one grid step == one sample, activations lane-packed
# as (H, W*C).  All conv work is banded MXU matmuls; accumulation stays in
# registers (traced values), only the tiny zero-bordered activation slabs
# live in VMEM scratch.
# ---------------------------------------------------------------------------
def _fused_res_block_v2_kernel(
    x_ref,            # (1, H, W*Cin)        input sample (compute dtype)
    bw1_ref,          # (3, W*Cin, W*Cout)   banded conv1 weights per kh tap
    s1_ref, b1_ref,   # (1, W*Cin)           folded BN1 (pre-activation #1), f32
    bw2_ref,          # (3, W*Cout, W*Cout)  banded conv2 weights per kh tap
    s2_ref, b2_ref,   # (1, W*Cout)          folded BN2 (pre-activation #2), f32
    bwsc_ref,         # (W*Cin, W*Cout)      block-diagonal 1x1 shortcut
    ssc_ref, bsc_ref, # (1, W*Cin)           folded BN of branch2, f32
    o_ref,            # (1, H, W*Cout)
    a_pad,            # VMEM (H+2, W*Cin)    zero-bordered conv1 input
    c_pad,            # VMEM (H+2, W*Cout)   zero-bordered conv2 input
):
    H = x_ref.shape[1]
    WCin = x_ref.shape[2]
    WCout = o_ref.shape[2]
    cd = a_pad.dtype                      # MXU operand dtype (bf16 or f32)

    x = x_ref[0].astype(jnp.float32)      # (H, W*Cin), BN math in f32

    # ---- branch2 first (ends x's live range early): BN + ReLU + 1x1 conv.
    xs = jnp.maximum(x * ssc_ref[...] + bsc_ref[...], 0.0).astype(cd)
    acc = jnp.dot(xs, bwsc_ref[...],
                  preferred_element_type=jnp.float32)        # (H, W*Cout) f32

    # ---- branch1 pre-activation #1: folded BN1 + ReLU, halo rows zeroed.
    a = jnp.maximum(x * s1_ref[...] + b1_ref[...], 0.0).astype(cd)
    a_pad[pl.ds(0, 1), :] = jnp.zeros((1, WCin), cd)
    a_pad[pl.ds(H + 1, 1), :] = jnp.zeros((1, WCin), cd)
    a_pad[pl.ds(1, H), :] = a

    # ---- conv1 (3x3, inp->oup): 3 banded matmuls (kh taps), register acc.
    y = jnp.dot(a_pad[pl.ds(0, H), :], bw1_ref[0],
                preferred_element_type=jnp.float32)
    for kh in (1, 2):
        y = y + jnp.dot(a_pad[pl.ds(kh, H), :], bw1_ref[kh],
                        preferred_element_type=jnp.float32)

    # ---- branch1 pre-activation #2: folded BN2 + ReLU, halo rows zeroed.
    c = jnp.maximum(y * s2_ref[...] + b2_ref[...], 0.0).astype(cd)
    c_pad[pl.ds(0, 1), :] = jnp.zeros((1, WCout), cd)
    c_pad[pl.ds(H + 1, 1), :] = jnp.zeros((1, WCout), cd)
    c_pad[pl.ds(1, H), :] = c

    # ---- conv2 (3x3, oup->oup) accumulated on top of the shortcut.
    for kh in (0, 1, 2):
        acc = acc + jnp.dot(c_pad[pl.ds(kh, H), :], bw2_ref[kh],
                            preferred_element_type=jnp.float32)

    # ---- Combine('ADD'): plain sum, no final BN / activation in V2.
    o_ref[...] = acc.reshape(1, H, WCout).astype(o_ref.dtype)


# ---------------------------------------------------------------------------
# Band-weight construction (wrapper-side, pure JAX).
# ---------------------------------------------------------------------------
def _band_conv3_weights(w_hwio, W):
    """(3,3,Cin,Cout) HWIO -> (3, W*Cin, W*Cout): per-kh block-banded matrix
    realizing the kw taps + SAME W-padding in the lane-packed layout."""
    _, _, Cin, Cout = w_hwio.shape
    wi = jnp.arange(W)[:, None]            # input W position
    wo = jnp.arange(W)[None, :]            # output W position
    kw = wi - wo + 1                       # tap connecting wi -> wo
    valid = (kw >= 0) & (kw <= 2)
    kw_c = jnp.clip(kw, 0, 2)

    def one(kh):
        w_k = w_hwio[kh]                                     # (3, Cin, Cout)
        blocks = jnp.where(valid[:, :, None, None], w_k[kw_c], 0.0)
        # blocks[wi, wo, ci, co] -> [wi*Cin+ci, wo*Cout+co]
        return jnp.transpose(blocks, (0, 2, 1, 3)).reshape(W * Cin, W * Cout)

    return jnp.stack([one(0), one(1), one(2)], axis=0)


def _band_conv1_weight(w_io, W):
    """(Cin,Cout) -> (W*Cin, W*Cout) block-diagonal 1x1 conv in packed layout."""
    Cin, Cout = w_io.shape
    eye = jnp.eye(W, dtype=w_io.dtype)
    return jnp.einsum("wv,io->wivo", eye, w_io).reshape(W * Cin, W * Cout)


def _pack_cvec(v, W):
    """(1, C) per-channel vector -> (1, W*C) lane-packed (c fastest)."""
    return jnp.tile(v, (1, W))


# ---------------------------------------------------------------------------
# Wrappers
# ---------------------------------------------------------------------------
def res_basic_block_v2_nhwc(x, params, *, compute_dtype=jnp.bfloat16):
    """Fused ResBasicBlockV2 forward. NHWC in / NHWC out (compute_dtype out)."""
    N, H, W, Cin = x.shape
    Cout = params["w1"].shape[-1]
    cd = compute_dtype
    WCin, WCout = W * Cin, W * Cout

    # Lane-packed activations: ship compute-dtype over HBM (bf16 on perf path).
    x_p = x.reshape(N, H, WCin).astype(cd)

    # Banded weights (W padding + kw taps folded in) and packed BN params.
    bw1 = _band_conv3_weights(params["w1"], W).astype(cd)
    bw2 = _band_conv3_weights(params["w2"], W).astype(cd)
    bwsc = _band_conv1_weight(params["wsc"], W).astype(cd)
    s1, b1 = _pack_cvec(params["scale1"], W), _pack_cvec(params["bias1"], W)
    s2, b2 = _pack_cvec(params["scale2"], W), _pack_cvec(params["bias2"], W)
    ssc, bsc = _pack_cvec(params["scale_sc"], W), _pack_cvec(params["bias_sc"], W)

    def full(shape):   # whole-array block, constant block index -> stays resident
        zero = (0,) * len(shape)
        return pl.BlockSpec(shape, lambda n, _z=zero: _z)

    isz = jnp.dtype(cd).itemsize
    flops = 2 * N * H * (3 * WCin * WCout + 3 * WCout * WCout + WCin * WCout)
    bytes_accessed = (
        x_p.size * isz
        + (bw1.size + bw2.size + bwsc.size) * isz
        + (s1.size + b1.size + s2.size + b2.size + ssc.size + bsc.size) * 4
        + N * H * WCout * isz)

    out_p = pl.pallas_call(
        _fused_res_block_v2_kernel,
        out_shape=jax.ShapeDtypeStruct((N, H, WCout), cd),
        grid_spec=pltpu.PrefetchScalarGridSpec(
            num_scalar_prefetch=0,
            grid=(N,),
            in_specs=[
                pl.BlockSpec((1, H, WCin), lambda n: (n, 0, 0)),
                full((3, WCin, WCout)),
                full((1, WCin)), full((1, WCin)),
                full((3, WCout, WCout)),
                full((1, WCout)), full((1, WCout)),
                full((WCin, WCout)),
                full((1, WCin)), full((1, WCin)),
            ],
            out_specs=pl.BlockSpec((1, H, WCout), lambda n: (n, 0, 0)),
            scratch_shapes=[
                pltpu.VMEM((H + 2, WCin), cd),
                pltpu.VMEM((H + 2, WCout), cd),
            ],
        ),
        compiler_params=pltpu.CompilerParams(
            dimension_semantics=("parallel",),
            vmem_limit_bytes=32 * 1024 * 1024,
        ),
        cost_estimate=pl.CostEstimate(
            flops=int(flops), transcendentals=0,
            bytes_accessed=int(bytes_accessed)),
    )(x_p, bw1, s1, b1, bw2, s2, b2, bwsc, ssc, bsc)

    return out_p.reshape(N, H, W, Cout)


def res_basic_block_v2_nchw(x_nchw, params, *, compute_dtype=jnp.bfloat16):
    """NCHW adapter (layout glue only) for parity with the PyTorch module."""
    x = jnp.transpose(x_nchw, (0, 2, 3, 1))
    y = res_basic_block_v2_nhwc(x, params, compute_dtype=compute_dtype)
    return jnp.transpose(y, (0, 3, 1, 2))


# ---------------------------------------------------------------------------
# Deterministic synthetic parameters (BN folded, eval mode). HWIO conv weights.
# ---------------------------------------------------------------------------
def make_params(key, inp, oup, eps=1e-5):
    ks = jax.random.split(key, 15)

    def fold_bn(gamma, beta, mean, var):
        scale = gamma / jnp.sqrt(var + eps)
        bias = beta - mean * scale
        return scale.reshape(1, -1), bias.reshape(1, -1)

    def bn(k0, k1, k2, k3, c):
        g = 1.0 + 0.1 * jax.random.normal(k0, (c,), jnp.float32)
        b = 0.1 * jax.random.normal(k1, (c,), jnp.float32)
        m = 0.05 * jax.random.normal(k2, (c,), jnp.float32)
        v = 1.0 + 0.1 * jnp.abs(jax.random.normal(k3, (c,), jnp.float32))
        return fold_bn(g, b, m, v)

    scale1, bias1 = bn(ks[0], ks[1], ks[2], ks[3], inp)        # branch1.norm1 (inp)
    scale2, bias2 = bn(ks[4], ks[5], ks[6], ks[7], oup)        # branch1.norm2 (oup)
    scale_sc, bias_sc = bn(ks[8], ks[9], ks[10], ks[11], inp)  # branch2.norm (inp)

    w1 = 0.1 * jax.random.normal(ks[12], (3, 3, inp, oup), jnp.float32)
    w2 = 0.1 * jax.random.normal(ks[13], (3, 3, oup, oup), jnp.float32)
    wsc = 0.1 * jax.random.normal(ks[14], (inp, oup), jnp.float32)

    return dict(w1=w1, scale1=scale1, bias1=bias1,
                w2=w2, scale2=scale2, bias2=bias2,
                wsc=wsc, scale_sc=scale_sc, bias_sc=bias_sc)


# ---------------------------------------------------------------------------
# Pure-JAX reference (matches the PyTorch ResBasicBlockV2 forward, eval mode)
# ---------------------------------------------------------------------------
def ref_forward_nchw(x_nchw, params):
    x = jnp.transpose(x_nchw, (0, 2, 3, 1))
    dn = ("NHWC", "HWIO", "NHWC")
    a = jnp.maximum(x * params["scale1"] + params["bias1"], 0.0)
    y = lax.conv_general_dilated(a, params["w1"], (1, 1), "SAME",
                                 dimension_numbers=dn)
    c = jnp.maximum(y * params["scale2"] + params["bias2"], 0.0)
    z = lax.conv_general_dilated(c, params["w2"], (1, 1), "SAME",
                                 dimension_numbers=dn)
    xs = jnp.maximum(x * params["scale_sc"] + params["bias_sc"], 0.0)
    sc = jnp.einsum("nhwc,co->nhwo", xs, params["wsc"])
    out = z + sc           # Combine('ADD'); no trailing activation in V2
    return jnp.transpose(out, (0, 3, 1, 2))


if __name__ == "__main__":
    key = jax.random.PRNGKey(0)
    k_x, k_p = jax.random.split(key)

    N, Cin, Cout, H, W = 2, 4, 8, 16, 16
    x = jax.random.normal(k_x, (N, Cin, H, W), jnp.float32)
    params = make_params(k_p, Cin, Cout)

    ref = ref_forward_nchw(x, params)

    # f32 compute path: tight correctness check (mathematically identical to
    # the conv reference up to summation order).
    f32_fn = jax.jit(
        lambda a, p: res_basic_block_v2_nchw(a, p, compute_dtype=jnp.float32))
    out_f32 = jax.block_until_ready(f32_fn(x, params))
    assert out_f32.shape == (N, Cout, H, W)
    assert jnp.allclose(out_f32, ref, rtol=1e-4, atol=1e-4), "f32 mismatch vs reference"

    # bf16 compute path (perf path): bf16 over HBM + bf16 MXU operands, f32 acc.
    bf16_fn = jax.jit(
        lambda a, p: res_basic_block_v2_nchw(a, p, compute_dtype=jnp.bfloat16))
    out_bf16 = jax.block_until_ready(bf16_fn(x, params))
    assert out_bf16.shape == (N, Cout, H, W)
    assert jnp.allclose(out_bf16.astype(jnp.float32), ref,
                        rtol=5e-2, atol=5e-2), "bf16 mismatch vs reference"

    print("KERNEL_OK")
</pallas_src>

<mosaic_0001>
module attributes {stable_mosaic.version = 11 : i64} {
  func.func @_fused_res_block_v2_kernel(%arg0: i32, %arg1: memref<1x16x64xf32, #tpu.memory_space<vmem>>, %arg2: memref<3x64x128xf32, #tpu.memory_space<vmem>>, %arg3: memref<1x64xf32, #tpu.memory_space<vmem>>, %arg4: memref<1x64xf32, #tpu.memory_space<vmem>>, %arg5: memref<3x128x128xf32, #tpu.memory_space<vmem>>, %arg6: memref<1x128xf32, #tpu.memory_space<vmem>>, %arg7: memref<1x128xf32, #tpu.memory_space<vmem>>, %arg8: memref<64x128xf32, #tpu.memory_space<vmem>>, %arg9: memref<1x64xf32, #tpu.memory_space<vmem>>, %arg10: memref<1x64xf32, #tpu.memory_space<vmem>>, %arg11: memref<1x16x128xf32, #tpu.memory_space<vmem>>, %arg12: memref<18x64xf32, #tpu.memory_space<vmem>>, %arg13: memref<18x128xf32, #tpu.memory_space<vmem>>) attributes {dimension_semantics = [#tpu.dimension_semantics<parallel>], iteration_bounds = array<i64: 2>, scalar_prefetch = 0 : i64, scratch_operands = 2 : i64, tpu.core_type = #tpu.core_type<tc>, window_params = [{transform_indices = @transform_0, window_bounds = array<i64: 1, 16, 64>}, {pipeline_mode = #tpu.pipeline_mode<synchronous>, transform_indices = @transform_1, window_bounds = array<i64: 3, 64, 128>}, {pipeline_mode = #tpu.pipeline_mode<synchronous>, transform_indices = @transform_2, window_bounds = array<i64: 1, 64>}, {pipeline_mode = #tpu.pipeline_mode<synchronous>, transform_indices = @transform_3, window_bounds = array<i64: 1, 64>}, {pipeline_mode = #tpu.pipeline_mode<synchronous>, transform_indices = @transform_4, window_bounds = array<i64: 3, 128, 128>}, {pipeline_mode = #tpu.pipeline_mode<synchronous>, transform_indices = @transform_5, window_bounds = array<i64: 1, 128>}, {pipeline_mode = #tpu.pipeline_mode<synchronous>, transform_indices = @transform_6, window_bounds = array<i64: 1, 128>}, {pipeline_mode = #tpu.pipeline_mode<synchronous>, transform_indices = @transform_7, window_bounds = array<i64: 64, 128>}, {pipeline_mode = #tpu.pipeline_mode<synchronous>, transform_indices = @transform_8, window_bounds = array<i64: 1, 64>}, {pipeline_mode = #tpu.pipeline_mode<synchronous>, transform_indices = @transform_9, window_bounds = array<i64: 1, 64>}, {transform_indices = @transform_10, window_bounds = array<i64: 1, 16, 128>}]} {
    %c0 = arith.constant 0 : index
    %c0_0 = arith.constant 0 : index
    %c0_1 = arith.constant 0 : index
    %0 = vector.load %arg1[%c0, %c0_0, %c0_1] : memref<1x16x64xf32, #tpu.memory_space<vmem>>, vector<1x16x64xf32>
    %1 = vector.shape_cast %0 : vector<1x16x64xf32> to vector<16x64xf32>
    %c0_2 = arith.constant 0 : index
    %c0_3 = arith.constant 0 : index
    %2 = vector.load %arg9[%c0_2, %c0_3] : memref<1x64xf32, #tpu.memory_space<vmem>>, vector<1x64xf32>
    %3 = vector.broadcast %2 : vector<1x64xf32> to vector<16x64xf32>
    %4 = arith.mulf %1, %3 : vector<16x64xf32>
    %c0_4 = arith.constant 0 : index
    %c0_5 = arith.constant 0 : index
    %5 = vector.load %arg10[%c0_4, %c0_5] : memref<1x64xf32, #tpu.memory_space<vmem>>, vector<1x64xf32>
    %6 = vector.broadcast %5 : vector<1x64xf32> to vector<16x64xf32>
    %7 = arith.addf %4, %6 : vector<16x64xf32>
    %cst = arith.constant 0.000000e+00 : f32
    %8 = vector.broadcast %cst : f32 to vector<16x64xf32>
    %9 = arith.maximumf %7, %8 : vector<16x64xf32>
    %c0_6 = arith.constant 0 : index
    %c0_7 = arith.constant 0 : index
    %10 = vector.load %arg8[%c0_6, %c0_7] : memref<64x128xf32, #tpu.memory_space<vmem>>, vector<64x128xf32>
    %cst_8 = arith.constant dense<0.000000e+00> : vector<16x128xf32>
    %11 = tpu.matmul %9, %10, %cst_8 {dimension_numbers = #tpu.dot_dimension_numbers<[1], [0], [0], [1], [0, 0, 1, 1], [], []>} : vector<16x64xf32>, vector<64x128xf32>, vector<16x128xf32> -> vector<16x128xf32>
    %c0_9 = arith.constant 0 : index
    %c0_10 = arith.constant 0 : index
    %12 = vector.load %arg3[%c0_9, %c0_10] : memref<1x64xf32, #tpu.memory_space<vmem>>, vector<1x64xf32>
    %13 = vector.broadcast %12 : vector<1x64xf32> to vector<16x64xf32>
    %14 = arith.mulf %1, %13 : vector<16x64xf32>
    %c0_11 = arith.constant 0 : index
    %c0_12 = arith.constant 0 : index
    %15 = vector.load %arg4[%c0_11, %c0_12] : memref<1x64xf32, #tpu.memory_space<vmem>>, vector<1x64xf32>
    %16 = vector.broadcast %15 : vector<1x64xf32> to vector<16x64xf32>
    %17 = arith.addf %14, %16 : vector<16x64xf32>
    %cst_13 = arith.constant 0.000000e+00 : f32
    %18 = vector.broadcast %cst_13 : f32 to vector<16x64xf32>
    %19 = arith.maximumf %17, %18 : vector<16x64xf32>
    %cst_14 = arith.constant 0.000000e+00 : f32
    %20 = vector.broadcast %cst_14 : f32 to vector<1x64xf32>
    %c0_15 = arith.constant 0 : index
    %c0_16 = arith.constant 0 : index
    %21 = vector.load %arg12[%c0_15, %c0_16] : memref<18x64xf32, #tpu.memory_space<vmem>>, vector<1x64xf32>
    tpu.vector_store %arg12[%c0_15, %c0_16], %20 {strides = array<i32>} : memref<18x64xf32, #tpu.memory_space<vmem>>, vector<1x64xf32>,
    %cst_17 = arith.constant 0.000000e+00 : f32
    %22 = vector.broadcast %cst_17 : f32 to vector<1x64xf32>
    %c17 = arith.constant 17 : index
    %c0_18 = arith.constant 0 : index
    %23 = vector.load %arg12[%c17, %c0_18] : memref<18x64xf32, #tpu.memory_space<vmem>>, vector<1x64xf32>
    tpu.vector_store %arg12[%c17, %c0_18], %22 {strides = array<i32>} : memref<18x64xf32, #tpu.memory_space<vmem>>, vector<1x64xf32>,
    %c1 = arith.constant 1 : index
    %c0_19 = arith.constant 0 : index
    %24 = vector.load %arg12[%c1, %c0_19] : memref<18x64xf32, #tpu.memory_space<vmem>>, vector<16x64xf32>
    tpu.vector_store %arg12[%c1, %c0_19], %19 {strides = array<i32>} : memref<18x64xf32, #tpu.memory_space<vmem>>, vector<16x64xf32>,
    %c0_20 = arith.constant 0 : index
    %c0_21 = arith.constant 0 : index
    %25 = vector.load %arg12[%c0_20, %c0_21] : memref<18x64xf32, #tpu.memory_space<vmem>>, vector<16x64xf32>
    %c0_22 = arith.constant 0 : index
    %c0_23 = arith.constant 0 : index
    %c0_24 = arith.constant 0 : index
    %26 = vector.load %arg2[%c0_22, %c0_23, %c0_24] : memref<3x64x128xf32, #tpu.memory_space<vmem>>, vector<1x64x128xf32>
    %27 = vector.shape_cast %26 : vector<1x64x128xf32> to vector<64x128xf32>
    %cst_25 = arith.constant dense<0.000000e+00> : vector<16x128xf32>
    %28 = tpu.matmul %25, %27, %cst_25 {dimension_numbers = #tpu.dot_dimension_numbers<[1], [0], [0], [1], [0, 0, 1, 1], [], []>} : vector<16x64xf32>, vector<64x128xf32>, vector<16x128xf32> -> vector<16x128xf32>
    %c1_26 = arith.constant 1 : index
    %c0_27 = arith.constant 0 : index
    %29 = vector.load %arg12[%c1_26, %c0_27] : memref<18x64xf32, #tpu.memory_space<vmem>>, vector<16x64xf32>
    %c1_28 = arith.constant 1 : index
    %c0_29 = arith.constant 0 : index
    %c0_30 = arith.constant 0 : index
    %30 = vector.load %arg2[%c1_28, %c0_29, %c0_30] : memref<3x64x128xf32, #tpu.memory_space<vmem>>, vector<1x64x128xf32>
    %31 = vector.shape_cast %30 : vector<1x64x128xf32> to vector<64x128xf32>
    %cst_31 = arith.constant dense<0.000000e+00> : vector<16x128xf32>
    %32 = tpu.matmul %29, %31, %cst_31 {dimension_numbers = #tpu.dot_dimension_numbers<[1], [0], [0], [1], [0, 0, 1, 1], [], []>} : vector<16x64xf32>, vector<64x128xf32>, vector<16x128xf32> -> vector<16x128xf32>
    %33 = arith.addf %28, %32 : vector<16x128xf32>
    %c2 = arith.constant 2 : index
    %c0_32 = arith.constant 0 : index
    %34 = vector.load %arg12[%c2, %c0_32] : memref<18x64xf32, #tpu.memory_space<vmem>>, vector<16x64xf32>
    %c2_33 = arith.constant 2 : index
    %c0_34 = arith.constant 0 : index
    %c0_35 = arith.constant 0 : index
    %35 = vector.load %arg2[%c2_33, %c0_34, %c0_35] : memref<3x64x128xf32, #tpu.memory_space<vmem>>, vector<1x64x128xf32>
    %36 = vector.shape_cast %35 : vector<1x64x128xf32> to vector<64x128xf32>
    %cst_36 = arith.constant dense<0.000000e+00> : vector<16x128xf32>
    %37 = tpu.matmul %34, %36, %cst_36 {dimension_numbers = #tpu.dot_dimension_numbers<[1], [0], [0], [1], [0, 0, 1, 1], [], []>} : vector<16x64xf32>, vector<64x128xf32>, vector<16x128xf32> -> vector<16x128xf32>
    %38 = arith.addf %33, %37 : vector<16x128xf32>
    %c0_37 = arith.constant 0 : index
    %c0_38 = arith.constant 0 : index
    %39 = vector.load %arg6[%c0_37, %c0_38] : memref<1x128xf32, #tpu.memory_space<vmem>>, vector<1x128xf32>
    %40 = vector.broadcast %39 : vector<1x128xf32> to vector<16x128xf32>
    %41 = arith.mulf %38, %40 : vector<16x128xf32>
    %c0_39 = arith.constant 0 : index
    %c0_40 = arith.constant 0 : index
    %42 = vector.load %arg7[%c0_39, %c0_40] : memref<1x128xf32, #tpu.memory_space<vmem>>, vector<1x128xf32>
    %43 = vector.broadcast %42 : vector<1x128xf32> to vector<16x128xf32>
    %44 = arith.addf %41, %43 : vector<16x128xf32>
    %cst_41 = arith.constant 0.000000e+00 : f32
    %45 = vector.broadcast %cst_41 : f32 to vector<16x128xf32>
    %46 = arith.maximumf %44, %45 : vector<16x128xf32>
    %cst_42 = arith.constant 0.000000e+00 : f32
    %47 = vector.broadcast %cst_42 : f32 to vector<1x128xf32>
    %c0_43 = arith.constant 0 : index
    %c0_44 = arith.constant 0 : index
    %48 = vector.load %arg13[%c0_43, %c0_44] : memref<18x128xf32, #tpu.memory_space<vmem>>, vector<1x128xf32>
    tpu.vector_store %arg13[%c0_43, %c0_44], %47 {strides = array<i32>} : memref<18x128xf32, #tpu.memory_space<vmem>>, vector<1x128xf32>,
    %cst_45 = arith.constant 0.000000e+00 : f32
    %49 = vector.broadcast %cst_45 : f32 to vector<1x128xf32>
    %c17_46 = arith.constant 17 : index
    %c0_47 = arith.constant 0 : index
    %50 = vector.load %arg13[%c17_46, %c0_47] : memref<18x128xf32, #tpu.memory_space<vmem>>, vector<1x128xf32>
    tpu.vector_store %arg13[%c17_46, %c0_47], %49 {strides = array<i32>} : memref<18x128xf32, #tpu.memory_space<vmem>>, vector<1x128xf32>,
    %c1_48 = arith.constant 1 : index
    %c0_49 = arith.constant 0 : index
    %51 = vector.load %arg13[%c1_48, %c0_49] : memref<18x128xf32, #tpu.memory_space<vmem>>, vector<16x128xf32>
    tpu.vector_store %arg13[%c1_48, %c0_49], %46 {strides = array<i32>} : memref<18x128xf32, #tpu.memory_space<vmem>>, vector<16x128xf32>,
    %c0_50 = arith.constant 0 : index
    %c0_51 = arith.constant 0 : index
    %52 = vector.load %arg13[%c0_50, %c0_51] : memref<18x128xf32, #tpu.memory_space<vmem>>, vector<16x128xf32>
    %c0_52 = arith.constant 0 : index
    %c0_53 = arith.constant 0 : index
    %c0_54 = arith.constant 0 : index
    %53 = vector.load %arg5[%c0_52, %c0_53, %c0_54] : memref<3x128x128xf32, #tpu.memory_space<vmem>>, vector<1x128x128xf32>
    %54 = vector.shape_cast %53 : vector<1x128x128xf32> to vector<128x128xf32>
    %cst_55 = arith.constant dense<0.000000e+00> : vector<16x128xf32>
    %55 = tpu.matmul %52, %54, %cst_55 {dimension_numbers = #tpu.dot_dimension_numbers<[1], [0], [0], [1], [0, 0, 1, 1], [], []>} : vector<16x128xf32>, vector<128x128xf32>, vector<16x128xf32> -> vector<16x128xf32>
    %56 = arith.addf %11, %55 : vector<16x128xf32>
    %c1_56 = arith.constant 1 : index
    %c0_57 = arith.constant 0 : index
    %57 = vector.load %arg13[%c1_56, %c0_57] : memref<18x128xf32, #tpu.memory_space<vmem>>, vector<16x128xf32>
    %c1_58 = arith.constant 1 : index
    %c0_59 = arith.constant 0 : index
    %c0_60 = arith.constant 0 : index
    %58 = vector.load %arg5[%c1_58, %c0_59, %c0_60] : memref<3x128x128xf32, #tpu.memory_space<vmem>>, vector<1x128x128xf32>
    %59 = vector.shape_cast %58 : vector<1x128x128xf32> to vector<128x128xf32>
    %cst_61 = arith.constant dense<0.000000e+00> : vector<16x128xf32>
    %60 = tpu.matmul %57, %59, %cst_61 {dimension_numbers = #tpu.dot_dimension_numbers<[1], [0], [0], [1], [0, 0, 1, 1], [], []>} : vector<16x128xf32>, vector<128x128xf32>, vector<16x128xf32> -> vector<16x128xf32>
    %61 = arith.addf %56, %60 : vector<16x128xf32>
    %c2_62 = arith.constant 2 : index
    %c0_63 = arith.constant 0 : index
    %62 = vector.load %arg13[%c2_62, %c0_63] : memref<18x128xf32, #tpu.memory_space<vmem>>, vector<16x128xf32>
    %c2_64 = arith.constant 2 : index
    %c0_65 = arith.constant 0 : index
    %c0_66 = arith.constant 0 : index
    %63 = vector.load %arg5[%c2_64, %c0_65, %c0_66] : memref<3x128x128xf32, #tpu.memory_space<vmem>>, vector<1x128x128xf32>
    %64 = vector.shape_cast %63 : vector<1x128x128xf32> to vector<128x128xf32>
    %cst_67 = arith.constant dense<0.000000e+00> : vector<16x128xf32>
    %65 = tpu.matmul %62, %64, %cst_67 {dimension_numbers = #tpu.dot_dimension_numbers<[1], [0], [0], [1], [0, 0, 1, 1], [], []>} : vector<16x128xf32>, vector<128x128xf32>, vector<16x128xf32> -> vector<16x128xf32>
    %66 = arith.addf %61, %65 : vector<16x128xf32>
    %67 = vector.shape_cast %66 : vector<16x128xf32> to vector<1x16x128xf32>
    %c0_68 = arith.constant 0 : index
    %c0_69 = arith.constant 0 : index
    %c0_70 = arith.constant 0 : index
    %68 = vector.load %arg11[%c0_68, %c0_69, %c0_70] : memref<1x16x128xf32, #tpu.memory_space<vmem>>, vector<1x16x128xf32>
    tpu.vector_store %arg11[%c0_68, %c0_69, %c0_70], %67 {strides = array<i32>} : memref<1x16x128xf32, #tpu.memory_space<vmem>>, vector<1x16x128xf32>,
    return
  }
  func.func @transform_0(%arg0: i32) -> (i32, i32, i32) {
    %c0_i32 = arith.constant 0 : i32
    %c0_i32_0 = arith.constant 0 : i32
    %c0_i32_1 = arith.constant 0 : i32
    return %arg0, %c0_i32, %c0_i32_0 : i32, i32, i32
  }
  func.func @transform_1(%arg0: i32) -> (i32, i32, i32) {
    %c0_i32 = arith.constant 0 : i32
    %c0_i32_0 = arith.constant 0 : i32
    %c0_i32_1 = arith.constant 0 : i32
    %c0_i32_2 = arith.constant 0 : i32
    return %c0_i32, %c0_i32_0, %c0_i32_1 : i32, i32, i32
  }
  func.func @transform_2(%arg0: i32) -> (i32, i32) {
    %c0_i32 = arith.constant 0 : i32
    %c0_i32_0 = arith.constant 0 : i32
    %c0_i32_1 = arith.constant 0 : i32
    return %c0_i32, %c0_i32_0 : i32, i32
  }
  func.func @transform_3(%arg0: i32) -> (i32, i32) {
    %c0_i32 = arith.constant 0 : i32
    %c0_i32_0 = arith.constant 0 : i32
    %c0_i32_1 = arith.constant 0 : i32
    return %c0_i32, %c0_i32_0 : i32, i32
  }
  func.func @transform_4(%arg0: i32) -> (i32, i32, i32) {
    %c0_i32 = arith.constant 0 : i32
    %c0_i32_0 = arith.constant 0 : i32
    %c0_i32_1 = arith.constant 0 : i32
    %c0_i32_2 = arith.constant 0 : i32
    return %c0_i32, %c0_i32_0, %c0_i32_1 : i32, i32, i32
  }
  func.func @transform_5(%arg0: i32) -> (i32, i32) {
    %c0_i32 = arith.constant 0 : i32
    %c0_i32_0 = arith.constant 0 : i32
    %c0_i32_1 = arith.constant 0 : i32
    return %c0_i32, %c0_i32_0 : i32, i32
  }
  func.func @transform_6(%arg0: i32) -> (i32, i32) {
    %c0_i32 = arith.constant 0 : i32
    %c0_i32_0 = arith.constant 0 : i32
    %c0_i32_1 = arith.constant 0 : i32
    return %c0_i32, %c0_i32_0 : i32, i32
  }
  func.func @transform_7(%arg0: i32) -> (i32, i32) {
    %c0_i32 = arith.constant 0 : i32
    %c0_i32_0 = arith.constant 0 : i32
    %c0_i32_1 = arith.constant 0 : i32
    return %c0_i32, %c0_i32_0 : i32, i32
  }
  func.func @transform_8(%arg0: i32) -> (i32, i32) {
    %c0_i32 = arith.constant 0 : i32
    %c0_i32_0 = arith.constant 0 : i32
    %c0_i32_1 = arith.constant 0 : i32
    return %c0_i32, %c0_i32_0 : i32, i32
  }
  func.func @transform_9(%arg0: i32) -> (i32, i32) {
    %c0_i32 = arith.constant 0 : i32
    %c0_i32_0 = arith.constant 0 : i32
    %c0_i32_1 = arith.constant 0 : i32
    return %c0_i32, %c0_i32_0 : i32, i32
  }
  func.func @transform_10(%arg0: i32) -> (i32, i32, i32) {
    %c0_i32 = arith.constant 0 : i32
    %c0_i32_0 = arith.constant 0 : i32
    %c0_i32_1 = arith.constant 0 : i32
    return %arg0, %c0_i32, %c0_i32_0 : i32, i32, i32
  }
}

</mosaic_0001>

<llo_original>
// kernel: _lambda_.1
$region0: #{_lambda_.1}
  #allocation0 [shape = 'u32[]', space=smem, size = 0x4, offset = 0x4, fixed_abs, tag = 'smem constant byte address 0x4 - core index']
  #allocation1 [shape = 'u32[144,128]{1,0:T(1,128)}', space=vmem, size = 0x12000, scoped, tag = 'internal scratch']
  #allocation2 [shape = 'f32[18,64]{1,0:T(8,128)}', space=vmem, size = 0x3000, scoped, tag = 'scratch operand']
  #allocation3 [shape = 'f32[18,128]{1,0:T(8,128)}', space=vmem, size = 0x3000, scoped, tag = 'scratch operand']
  %s0 = inlined_call_operand.vmem [shape: f32[2,16,64], index: 0, kind: input, shape index: {}]
  %s1 = inlined_call_operand.vmem [shape: f32[3,64,128], index: 1, kind: input, shape index: {}]
  %s2 = inlined_call_operand.vmem [shape: f32[1,64], index: 2, kind: input, shape index: {}]
  %s3 = inlined_call_operand.vmem [shape: f32[1,64], index: 3, kind: input, shape index: {}]
  %s4 = inlined_call_operand.vmem [shape: f32[3,128,128], index: 4, kind: input, shape index: {}]
  %s5 = inlined_call_operand.vmem [shape: f32[1,128], index: 5, kind: input, shape index: {}]
  %s6 = inlined_call_operand.vmem [shape: f32[1,128], index: 6, kind: input, shape index: {}]
  %s7 = inlined_call_operand.vmem [shape: f32[64,128], index: 7, kind: input, shape index: {}]
  %s8 = inlined_call_operand.vmem [shape: f32[1,64], index: 8, kind: input, shape index: {}]
  %s9 = inlined_call_operand.vmem [shape: f32[1,64], index: 9, kind: input, shape index: {}]
  %s10 = inlined_call_operand.vmem [shape: f32[2,16,128], index: 10, kind: output, shape index: {}]
  %s11 = sld [smem:[#allocation0]]
  $region73: #{_lambda_.1} parent=0
    _
  %s13 = ssub.s32 1, %s11
  %s14 = scalar_select 0, %s13, %s11
  loop: start=0, step=1, limit=4
  $region2: #{_lambda_.1} parent=0 // loop_pre_header
    _
  $region3: #{_lambda_.1} parent=0 // loop_header
    %s16 = sphi 0, %s20
    %p17 = scmp.ge.s32.totalorder %s16, 4
    %s26 = sphi 0, %s28
    %s29 = sphi 0, %s26
    %s30 = sphi 0, %s29
    %s46 = sphi 0, %s30
    %s50 = sphi 0, %s50
    %s52 = sphi 0, %s50
    %s53 = sphi 0, %s52
    %s67 = sphi 0, %s53
    %s71 = sphi 0, %s71
    %s73 = sphi 0, %s71
    %s74 = sphi 0, %s73
    %s88 = sphi 0, %s74
    %s92 = sphi 0, %s92
    %s94 = sphi 0, %s92
    %s95 = sphi 0, %s94
    %s109 = sphi 0, %s95
    %s113 = sphi 0, %s113
    %s115 = sphi 0, %s113
    %s116 = sphi 0, %s115
    %s130 = sphi 0, %s116
    %s134 = sphi 0, %s134
    %s136 = sphi 0, %s134
    %s137 = sphi 0, %s136
    %s151 = sphi 0, %s137
    %s155 = sphi 0, %s155
    %s157 = sphi 0, %s155
    %s158 = sphi 0, %s157
    %s172 = sphi 0, %s158
    %s176 = sphi 0, %s176
    %s178 = sphi 0, %s176
    %s179 = sphi 0, %s178
    %s193 = sphi 0, %s179
    %s197 = sphi 0, %s197
    %s199 = sphi 0, %s197
    %s200 = sphi 0, %s199
    %s214 = sphi 0, %s200
    %s218 = sphi 0, %s218
    %s220 = sphi 0, %s218
    %s221 = sphi 0, %s220
    %s235 = sphi 0, %s221
    %s241 = sphi 0, %s243
    %s244 = sphi 0, %s241
    %s245 = sphi 0, %s244
    %s261 = sphi 0, %s245
  $region4: #{_lambda_.1} parent=0 // loop_header_branch
    %19 = sbr.rel (%p17) target = $region8
  $region5: #{_lambda_.1} parent=0 // loop_body
    %s21 = ssub.s32 %s16, 1
    %s22 = ssub.s32 %s16, 2
    %s23 = sadd.s32 %s16, 1
    %s24 = ssub.s32 %s16, %s23
    %p25 = scmp.eq.s32.totalorder %s24, 0
    %s27 = sadd.s32 %s26, 1
    %s28 = scalar_select %p25, %s26, %s27
    %p31 = pneg %p25
    %p32 = scmp.eq.s32.totalorder %s16, 1
    %p33 = por %p31, %p32
    %p34 = scmp.ne.s32.totalorder %s26, %s29
    %p35 = scmp.eq.s32.totalorder %s16, 0
    %p36 = por %p34, %p35
    %p37 = scmp.ne.s32.totalorder %s26, %s29
    %p38 = scmp.eq.s32.totalorder %s21, 1
    %p39 = por %p37, %p38
    %p40 = scmp.ne.s32.totalorder %s29, %s30
    %p41 = scmp.eq.s32.totalorder %s21, 0
    %p42 = por %p40, %p41
    %p43 = scmp.ne.s32.totalorder %s29, %s30
    %p44 = scmp.eq.s32.totalorder %s22, 1
    %p45 = por %p43, %p44
    %p47 = scmp.ne.s32.totalorder %s30, %s46
    %p48 = scmp.eq.s32.totalorder %s22, 0
    %p49 = por %p47, %p48
    %s51 = sadd.s32 %s50, 1
    %p54 = scmp.eq.s32.totalorder %s16, 1
    %p55 = scmp.ne.s32.totalorder %s50, %s52
    %p56 = scmp.eq.s32.totalorder %s16, 0
    %p57 = por %p55, %p56
    %p58 = scmp.ne.s32.totalorder %s50, %s52
    %p59 = scmp.eq.s32.totalorder %s21, 1
    %p60 = por %p58, %p59
    %p61 = scmp.ne.s32.totalorder %s52, %s53
    %p62 = scmp.eq.s32.totalorder %s21, 0
    %p63 = por %p61, %p62
    %p64 = scmp.ne.s32.totalorder %s52, %s53
    %p65 = scmp.eq.s32.totalorder %s22, 1
    %p66 = por %p64, %p65
    %p68 = scmp.ne.s32.totalorder %s53, %s67
    %p69 = scmp.eq.s32.totalorder %s22, 0
    %p70 = por %p68, %p69
    %s72 = sadd.s32 %s71, 1
    %p75 = scmp.eq.s32.totalorder %s16, 1
    %p76 = scmp.ne.s32.totalorder %s71, %s73
    %p77 = scmp.eq.s32.totalorder %s16, 0
    %p78 = por %p76, %p77
    %p79 = scmp.ne.s32.totalorder %s71, %s73
    %p80 = scmp.eq.s32.totalorder %s21, 1
    %p81 = por %p79, %p80
    %p82 = scmp.ne.s32.totalorder %s73, %s74
    %p83 = scmp.eq.s32.totalorder %s21, 0
    %p84 = por %p82, %p83
    %p85 = scmp.ne.s32.totalorder %s73, %s74
    %p86 = scmp.eq.s32.totalorder %s22, 1
    %p87 = por %p85, %p86
    %p89 = scmp.ne.s32.totalorder %s74, %s88
    %p90 = scmp.eq.s32.totalorder %s22, 0
    %p91 = por %p89, %p90
    %s93 = sadd.s32 %s92, 1
    %p96 = scmp.eq.s32.totalorder %s16, 1
    %p97 = scmp.ne.s32.totalorder %s92, %s94
    %p98 = scmp.eq.s32.totalorder %s16, 0
    %p99 = por %p97, %p98
    %p100 = scmp.ne.s32.totalorder %s92, %s94
    %p101 = scmp.eq.s32.totalorder %s21, 1
    %p102 = por %p100, %p101
    %p103 = scmp.ne.s32.totalorder %s94, %s95
    %p104 = scmp.eq.s32.totalorder %s21, 0
    %p105 = por %p103, %p104
    %p106 = scmp.ne.s32.totalorder %s94, %s95
    %p107 = scmp.eq.s32.totalorder %s22, 1
    %p108 = por %p106, %p107
    %p110 = scmp.ne.s32.totalorder %s95, %s109
    %p111 = scmp.eq.s32.totalorder %s22, 0
    %p112 = por %p110, %p111
    %s114 = sadd.s32 %s113, 1
    %p117 = scmp.eq.s32.totalorder %s16, 1
    %p118 = scmp.ne.s32.totalorder %s113, %s115
    %p119 = scmp.eq.s32.totalorder %s16, 0
    %p120 = por %p118, %p119
    %p121 = scmp.ne.s32.totalorder %s113, %s115
    %p122 = scmp.eq.s32.totalorder %s21, 1
    %p123 = por %p121, %p122
    %p124 = scmp.ne.s32.totalorder %s115, %s116
    %p125 = scmp.eq.s32.totalorder %s21, 0
    %p126 = por %p124, %p125
    %p127 = scmp.ne.s32.totalorder %s115, %s116
    %p128 = scmp.eq.s32.totalorder %s22, 1
    %p129 = por %p127, %p128
    %p131 = scmp.ne.s32.totalorder %s116, %s130
    %p132 = scmp.eq.s32.totalorder %s22, 0
    %p133 = por %p131, %p132
    %s135 = sadd.s32 %s134, 1
    %p138 = scmp.eq.s32.totalorder %s16, 1
    %p139 = scmp.ne.s32.totalorder %s134, %s136
    %p140 = scmp.eq.s32.totalorder %s16, 0
    %p141 = por %p139, %p140
    %p142 = scmp.ne.s32.totalorder %s134, %s136
    %p143 = scmp.eq.s32.totalorder %s21, 1
    %p144 = por %p142, %p143
    %p145 = scmp.ne.s32.totalorder %s136, %s137
    %p146 = scmp.eq.s32.totalorder %s21, 0
    %p147 = por %p145, %p146
    %p148 = scmp.ne.s32.totalorder %s136, %s137
    %p149 = scmp.eq.s32.totalorder %s22, 1
    %p150 = por %p148, %p149
    %p152 = scmp.ne.s32.totalorder %s137, %s151
    %p153 = scmp.eq.s32.totalorder %s22, 0
    %p154 = por %p152, %p153
    %s156 = sadd.s32 %s155, 1
    %p159 = scmp.eq.s32.totalorder %s16, 1
    %p160 = scmp.ne.s32.totalorder %s155, %s157
    %p161 = scmp.eq.s32.totalorder %s16, 0
    %p162 = por %p160, %p161
    %p163 = scmp.ne.s32.totalorder %s155, %s157
    %p164 = scmp.eq.s32.totalorder %s21, 1
    %p165 = por %p163, %p164
    %p166 = scmp.ne.s32.totalorder %s157, %s158
    %p167 = scmp.eq.s32.totalorder %s21, 0
    %p168 = por %p166, %p167
    %p169 = scmp.ne.s32.totalorder %s157, %s158
    %p170 = scmp.eq.s32.totalorder %s22, 1
    %p171 = por %p169, %p170
    %p173 = scmp.ne.s32.totalorder %s158, %s172
    %p174 = scmp.eq.s32.totalorder %s22, 0
    %p175 = por %p173, %p174
    %s177 = sadd.s32 %s176, 1
    %p180 = scmp.eq.s32.totalorder %s16, 1
    %p181 = scmp.ne.s32.totalorder %s176, %s178
    %p182 = scmp.eq.s32.totalorder %s16, 0
    %p183 = por %p181, %p182
    %p184 = scmp.ne.s32.totalorder %s176, %s178
    %p185 = scmp.eq.s32.totalorder %s21, 1
    %p186 = por %p184, %p185
    %p187 = scmp.ne.s32.totalorder %s178, %s179
    %p188 = scmp.eq.s32.totalorder %s21, 0
    %p189 = por %p187, %p188
    %p190 = scmp.ne.s32.totalorder %s178, %s179
    %p191 = scmp.eq.s32.totalorder %s22, 1
    %p192 = por %p190, %p191
    %p194 = scmp.ne.s32.totalorder %s179, %s193
    %p195 = scmp.eq.s32.totalorder %s22, 0
    %p196 = por %p194, %p195
    %s198 = sadd.s32 %s197, 1
    %p201 = scmp.eq.s32.totalorder %s16, 1
    %p202 = scmp.ne.s32.totalorder %s197, %s199
    %p203 = scmp.eq.s32.totalorder %s16, 0
    %p204 = por %p202, %p203
    %p205 = scmp.ne.s32.totalorder %s197, %s199
    %p206 = scmp.eq.s32.totalorder %s21, 1
    %p207 = por %p205, %p206
    %p208 = scmp.ne.s32.totalorder %s199, %s200
    %p209 = scmp.eq.s32.totalorder %s21, 0
    %p210 = por %p208, %p209
    %p211 = scmp.ne.s32.totalorder %s199, %s200
    %p212 = scmp.eq.s32.totalorder %s22, 1
    %p213 = por %p211, %p212
    %p215 = scmp.ne.s32.totalorder %s200, %s214
    %p216 = scmp.eq.s32.totalorder %s22, 0
    %p217 = por %p215, %p216
    %s219 = sadd.s32 %s218, 1
    %p222 = scmp.eq.s32.totalorder %s16, 1
    %p223 = scmp.ne.s32.totalorder %s218, %s220
    %p224 = scmp.eq.s32.totalorder %s16, 0
    %p225 = por %p223, %p224
    %p226 = scmp.ne.s32.totalorder %s218, %s220
    %p227 = scmp.eq.s32.totalorder %s21, 1
    %p228 = por %p226, %p227
    %p229 = scmp.ne.s32.totalorder %s220, %s221
    %p230 = scmp.eq.s32.totalorder %s21, 0
    %p231 = por %p229, %p230
    %p232 = scmp.ne.s32.totalorder %s220, %s221
    %p233 = scmp.eq.s32.totalorder %s22, 1
    %p234 = por %p232, %p233
    %p236 = scmp.ne.s32.totalorder %s221, %s235
    %p237 = scmp.eq.s32.totalorder %s22, 0
    %p238 = por %p236, %p237
    %s239 = ssub.s32 %s16, %s23
    %p240 = scmp.eq.s32.totalorder %s239, 0
    %s242 = sadd.s32 %s241, 1
    %s243 = scalar_select %p240, %s241, %s242
    %p246 = pneg %p240
    %p247 = scmp.eq.s32.totalorder %s16, 1
    %p248 = por %p246, %p247
    %p249 = scmp.ne.s32.totalorder %s241, %s244
    %p250 = scmp.eq.s32.totalorder %s16, 0
    %p251 = por %p249, %p250
    %p252 = scmp.ne.s32.totalorder %s241, %s244
    %p253 = scmp.eq.s32.totalorder %s21, 1
    %p254 = por %p252, %p253
    %p255 = scmp.ne.s32.totalorder %s244, %s245
    %p256 = scmp.eq.s32.totalorder %s21, 0
    %p257 = por %p255, %p256
    %p258 = scmp.ne.s32.totalorder %s244, %s245
    %p259 = scmp.eq.s32.totalorder %s22, 1
    %p260 = por %p258, %p259
    %p262 = scmp.ne.s32.totalorder %s245, %s261
    %p263 = scmp.eq.s32.totalorder %s22, 0
    %p264 = por %p262, %p263
    %p265 = scmp.le.s32.totalorder 1, %s16
    %p266 = scmp.lt.s32.totalorder %s16, 3
    %p267 = pnand %p265, %p266
    %p268 = pneg %p267
    // Predicated region
    $region9: #{_lambda_.1} parent=5 // pred_check
      _
    $region10: #{_lambda_.1} parent=5 // pred_check_branch
      %270 = sbr.rel (%p267) target = $region12
    $region11: #{_lambda_.1} parent=5 // pred_region
      %s271 = ssub.s32 %s16, 1
      // Predicated region
      $region13: #{_lambda_.1} parent=11 // pred_check
        %p272 = pneg %p63
      $region14: #{_lambda_.1} parent=11 // pred_check_branch
        %274 = sbr.rel (%p272) target = $region16
      $region15: #{_lambda_.1} parent=11 // pred_region
        _
      $region16: #{_lambda_.1} parent=11 // pred_fallthru
        _
      // Predicated region
      $region17: #{_lambda_.1} parent=11 // pred_check
        %p275 = pneg %p84
      $region18: #{_lambda_.1} parent=11 // pred_check_branch
        %277 = sbr.rel (%p275) target = $region20
      $region19: #{_lambda_.1} parent=11 // pred_region
        _
      $region20: #{_lambda_.1} parent=11 // pred_fallthru
        _
      // Predicated region
      $region21: #{_lambda_.1} parent=11 // pred_check
        %p278 = pneg %p105
      $region22: #{_lambda_.1} parent=11 // pred_check_branch
        %280 = sbr.rel (%p278) target = $region24
      $region23: #{_lambda_.1} parent=11 // pred_region
        _
      $region24: #{_lambda_.1} parent=11 // pred_fallthru
        _
      // Predicated region
      $region25: #{_lambda_.1} parent=11 // pred_check
        %p281 = pneg %p126
      $region26: #{_lambda_.1} parent=11 // pred_check_branch
        %283 = sbr.rel (%p281) target = $region28
      $region27: #{_lambda_.1} parent=11 // pred_region
        _
      $region28: #{_lambda_.1} parent=11 // pred_fallthru
        _
      // Predicated region
      $region29: #{_lambda_.1} parent=11 // pred_check
        %p284 = pneg %p147
      $region30: #{_lambda_.1} parent=11 // pred_check_branch
        %286 = sbr.rel (%p284) target = $region32
      $region31: #{_lambda_.1} parent=11 // pred_region
        _
      $region32: #{_lambda_.1} parent=11 // pred_fallthru
        _
      // Predicated region
      $region33: #{_lambda_.1} parent=11 // pred_check
        %p287 = pneg %p168
      $region34: #{_lambda_.1} parent=11 // pred_check_branch
        %289 = sbr.rel (%p287) target = $region36
      $region35: #{_lambda_.1} parent=11 // pred_region
        _
      $region36: #{_lambda_.1} parent=11 // pred_fallthru
        _
      // Predicated region
      $region37: #{_lambda_.1} parent=11 // pred_check
        %p290 = pneg %p189
      $region38: #{_lambda_.1} parent=11 // pred_check_branch
        %292 = sbr.rel (%p290) target = $region40
      $region39: #{_lambda_.1} parent=11 // pred_region
        _
      $region40: #{_lambda_.1} parent=11 // pred_fallthru
        _
      // Predicated region
      $region41: #{_lambda_.1} parent=11 // pred_check
        %p293 = pneg %p210
      $region42: #{_lambda_.1} parent=11 // pred_check_branch
        %295 = sbr.rel (%p293) target = $region44
      $region43: #{_lambda_.1} parent=11 // pred_region
        _
      $region44: #{_lambda_.1} parent=11 // pred_fallthru
        _
      // Predicated region
      $region45: #{_lambda_.1} parent=11 // pred_check
        %p296 = pneg %p231
      $region46: #{_lambda_.1} parent=11 // pred_check_branch
        %298 = sbr.rel (%p296) target = $region48
      $region47: #{_lambda_.1} parent=11 // pred_region
        _
      $region48: #{_lambda_.1} parent=11 // pred_fallthru
        _
    $region12: #{_lambda_.1} parent=5 // pred_fallthru
      _
    %p299 = scmp.lt.s32.totalorder %s16, 2
    // Predicated region
    $region49: #{_lambda_.1} parent=5 // pred_check
      %p300 = pneg %p299
    $region50: #{_lambda_.1} parent=5 // pred_check_branch
      %302 = sbr.rel (%p300) target = $region52
    $region51: #{_lambda_.1} parent=5 // pred_region
      // Predicated region
      $region53: #{_lambda_.1} parent=51 // pred_check
        %p303 = pneg %p36
      $region54: #{_lambda_.1} parent=51 // pred_check_branch
        %305 = sbr.rel (%p303) target = $region56
      $region55: #{_lambda_.1} parent=51 // pred_region
        %p306 = scmp.lt.s32.totalorder %s16, 1
        %s307 = scalar_select %p306, %s16, 1
        %s308 = smul.addr %s307, 2
        %s309 = smul.addr %s308, 8
        %s310 = scalar_lea.vmem %s0, %s309
      $region56: #{_lambda_.1} parent=51 // pred_fallthru
        _
    $region52: #{_lambda_.1} parent=5 // pred_fallthru
      _
    %p311 = scmp.le.s32.totalorder 1, %s16
    %p312 = scmp.lt.s32.totalorder %s16, 3
    %p313 = pnand %p311, %p312
    %p314 = pneg %p313
    // Predicated region
    $region57: #{_lambda_.1} parent=5 // pred_check
      _
    $region58: #{_lambda_.1} parent=5 // pred_check_branch
      %316 = sbr.rel (%p313) target = $region60
    $region59: #{_lambda_.1} parent=5 // pred_region
      %s317 = ssub.s32 %s16, 1
      %p318 = scmp.lt.s32.totalorder %s21, 1
      %s319 = scalar_select %p318, %s21, 1
      %s320 = smul.addr %s319, 2
      %s321 = smul.addr %s320, 8
      %s322 = scalar_lea.vmem %s0, %s321
      %p323 = pneg %p42
      %p324 = pneg %p39
      %p325 = pneg %p63
      %p326 = pneg %p60
      %p327 = pneg %p84
      %p328 = pneg %p81
      %p329 = pneg %p105
      %p330 = pneg %p102
      %p331 = pneg %p126
      %p332 = pneg %p123
      %p333 = pneg %p147
      %p334 = pneg %p144
      %p335 = pneg %p168
      %p336 = pneg %p165
      %p337 = pneg %p189
      %p338 = pneg %p186
      %p339 = pneg %p210
      %p340 = pneg %p207
      %p341 = pneg %p231
      %p342 = pneg %p228
      %p343 = pneg %p257
      %p344 = pneg %p254
      %p345 = scmp.lt.s32.totalorder %s21, 1
      %s346 = scalar_select %p345, %s21, 1
      %s347 = smul.addr %s346, 2
      %s348 = smul.addr %s347, 8
      %s349 = scalar_lea.vmem %s10, %s348
      %p350 = scmp.lt.s32.totalorder %s21, 1
      %s351 = scalar_select %p350, %s21, 1
      %s352 = smul.addr %s351, 2
      %s353 = smul.addr %s352, 8
      %s354 = scalar_lea.vmem %s0, %s353
      %p355 = scmp.lt.s32.totalorder %s21, 1
      %s356 = scalar_select %p355, %s21, 1
      %s357 = smul.addr %s356, 2
      %s358 = smul.addr %s357, 8
      %s359 = scalar_lea.vmem %s10, %s358
      %v360 = vld [vmem:[%s354] sm:$0xff]
      %v361 = vld [vmem:[%s354 + $0x8] sm:$0xff]
      %v362 = vld [vmem:[%s8] sm:$0x1]
      %v364 = vlaneseq
      %v365 = vshrl.u32 %v364, 7
      %v366 = vsub.s32 0, %v365
      %v367 = vrot.slane %v362, %v366
      %v369 = vmul.f32 %v360, %v367
      %v370 = vmul.f32 %v361, %v367
      %v371 = vld [vmem:[%s9] sm:$0x1]
      %v373 = vlaneseq
      %v374 = vshrl.u32 %v373, 7
      %v375 = vsub.s32 0, %v374
      %v376 = vrot.slane %v371, %v375
      %v378 = vadd.f32 %v369, %v376
      %v379 = vadd.f32 %v370, %v376
      %v380 = vmax.f32 %v378, 0.0
      %v381 = vmax.f32 %v379, 0.0
      %v382 = vld [vmem:[%s7] sm:$0xff]
      %v383 = vld [vmem:[%s7 + $0x8] sm:$0xff]
      %v384 = vld [vmem:[%s7 + $0x10] sm:$0xff]
      %v385 = vld [vmem:[%s7 + $0x18] sm:$0xff]
      %v386 = vld [vmem:[%s7 + $0x20] sm:$0xff]
      %v387 = vld [vmem:[%s7 + $0x28] sm:$0xff]
      %v388 = vld [vmem:[%s7 + $0x30] sm:$0xff]
      %v389 = vld [vmem:[%s7 + $0x38] sm:$0xff]
      %v390 = vld [vmem:[%s2] sm:$0x1]
      %v392 = vlaneseq
      %v393 = vshrl.u32 %v392, 7
      %v394 = vsub.s32 0, %v393
      %v395 = vrot.slane %v390, %v394
      %v397 = vmul.f32 %v360, %v395
      %v398 = vmul.f32 %v361, %v395
      %v399 = vld [vmem:[%s3] sm:$0x1]
      %v401 = vlaneseq
      %v402 = vshrl.u32 %v401, 7
      %v403 = vsub.s32 0, %v402
      %v404 = vrot.slane %v399, %v403
      %v406 = vadd.f32 %v397, %v404
      %v407 = vadd.f32 %v398, %v404
      %v408 = vmax.f32 %v406, 0.0
      %v409 = vmax.f32 %v407, 0.0
      %vm410 = vcmask 516096
      %411 = vst.msk [vmem:[#allocation2] sm:$0x1] %vm410, 0.0
      %412 = vst.msk [vmem:[#allocation2 + $0x11] sm:$0x1] %vm410, 0.0
      %vm413 = vcmask 523264
      %414 = vst.msk [vmem:[#allocation2 + $0x1] sm:$0xff] %vm413, %v408
      %415 = vst.msk [vmem:[#allocation2 + $0x9] sm:$0xff] %vm413, %v409
      %v416 = vld [vmem:[#allocation2] sm:$0xff]
      %v417 = vld [vmem:[#allocation2 + $0x8] sm:$0xff]
      %v418 = vld [vmem:[%s1] sm:$0xff]
      %v419 = vld [vmem:[%s1 + $0x8] sm:$0xff]
      %v420 = vld [vmem:[%s1 + $0x10] sm:$0xff]
      %v421 = vld [vmem:[%s1 + $0x18] sm:$0xff]
      %v422 = vld [vmem:[%s1 + $0x20] sm:$0xff]
      %v423 = vld [vmem:[%s1 + $0x28] sm:$0xff]
      %v424 = vld [vmem:[%s1 + $0x30] sm:$0xff]
      %v425 = vld [vmem:[%s1 + $0x38] sm:$0xff]
      %v426 = vld [vmem:[#allocation2 + $0x1] sm:$0xff]
      %v427 = vld [vmem:[#allocation2 + $0x9] sm:$0xff]
      %s428 = scalar_lea.vmem %s1, 64
      %v429 = vld [vmem:[%s428] sm:$0xff]
      %v430 = vld [vmem:[%s428 + $0x8] sm:$0xff]
      %v431 = vld [vmem:[%s428 + $0x10] sm:$0xff]
      %v432 = vld [vmem:[%s428 + $0x18] sm:$0xff]
      %v433 = vld [vmem:[%s428 + $0x20] sm:$0xff]
      %v434 = vld [vmem:[%s428 + $0x28] sm:$0xff]
      %v435 = vld [vmem:[%s428 + $0x30] sm:$0xff]
      %v436 = vld [vmem:[%s428 + $0x38] sm:$0xff]
      %v438 = vsel %vm413, %v426, 0
      %v441 = vsel %vm413, %v427, 0
      %443 = vmatprep.subr.mxu0 0.0
      %444 = vmatpush1.msra.mxu0 %v429
      %445 = vmatprep.subr.mxu0 0.0
      %446 = vmatpush1.msra.mxu0 %v430
      %447 = vmatprep.subr.mxu0 0.0
      %448 = vmatpush1.msra.mxu0 %v431
      %449 = vmatprep.subr.mxu0 0.0
      %450 = vmatpush1.msra.mxu0 %v432
      %451 = vmatprep.subr.mxu0 0.0
      %452 = vmatpush1.msra.mxu0 %v433
      %453 = vmatprep.subr.mxu0 0.0
      %454 = vmatpush1.msra.mxu0 %v434
      %455 = vmatprep.subr.mxu0 0.0
      %456 = vmatpush1.msra.mxu0 %v435
      %457 = vmatprep.subr.mxu0 0.0
      %458 = vmatpush1.msra.mxu0 %v436
      %459 = vmatprep.subr.mxu0 0.0
      %460 = vmatpush1.msra.mxu0 0.0
      %461 = vmatprep.subr.mxu0 0.0
      %462 = vmatpush1.msra.mxu0 0.0
      %463 = vmatprep.subr.mxu0 0.0
      %464 = vmatpush1.msra.mxu0 0.0
      %465 = vmatprep.subr.mxu0 0.0
      %466 = vmatpush1.msra.mxu0 0.0
      %467 = vmatprep.subr.mxu0 0.0
      %468 = vmatpush1.msra.mxu0 0.0
      %469 = vmatprep.subr.mxu0 0.0
      %470 = vmatpush1.msra.mxu0 0.0
      %471 = vmatprep.subr.mxu0 0.0
      %472 = vmatpush1.msra.mxu0 0.0
      %473 = vmatprep.subr.mxu0 0.0
      %474 = vmatpush1.msra.mxu0 0.0
      %475 = vmatprep.subr.mxu0 0.0
      %476 = vmatpush1.msra.mxu0 0.0
      %477 = vmatprep.subr.mxu0 0.0
      %478 = vmatpush1.msra.mxu0 0.0
      %479 = vmatprep.subr.mxu0 0.0
      %480 = vmatpush1.msra.mxu0 0.0
      %481 = vmatprep.subr.mxu0 0.0
      %482 = vmatpush1.msra.mxu0 0.0
      %483 = vmatprep.subr.mxu0 0.0
      %484 = vmatpush1.msra.mxu0 0.0
      %485 = vmatprep.subr.mxu0 0.0
      %486 = vmatpush1.msra.mxu0 0.0
      %487 = vmatprep.subr.mxu0 0.0
      %488 = vmatpush1.msra.mxu0 0.0
      %489 = vmatprep.subr.mxu0 0.0
      %490 = vmatpush1.msra.mxu0 0.0
      %491 = vmatprep.subr.mxu0 0.0
      %492 = vmatpush1.msra.mxu0 0.0
      %493 = vmatprep.subr.mxu0 0.0
      %494 = vmatpush1.msra.mxu0 0.0
      %495 = vmatprep.subr.mxu0 0.0
      %496 = vmatpush1.msra.mxu0 0.0
      %497 = vmatprep.subr.mxu0 0.0
      %498 = vmatpush1.msra.mxu0 0.0
      %499 = vmatprep.subr.mxu0 0.0
      %500 = vmatpush1.msra.mxu0 0.0
      %501 = vmatprep.subr.mxu0 0.0
      %502 = vmatpush1.msra.mxu0 0.0
      %503 = vmatprep.subr.mxu0 0.0
      %504 = vmatpush1.msra.mxu0 0.0
      %505 = vmatprep.subr.mxu0 0.0
      %506 = vmatpush1.msra.mxu0 0.0
      %507 = vmatprep.mubr.f32.mxu0 0.0
      %508 = vmatmul.mubr.f32.gmra.mrb[0].mxu0 %v438
      %v509 = vpop.f32.mrb[0].mxu0
      %v510 = vadd.f32 0.0, %v509
      %v511 = vpop.f32.mrb[0].mxu0
      %512 = vmatprep.mubr.f32.mxu0 0.0
      %513 = vmatmul.mubr.f32.gmra.mrb[0].mxu0 %v441
      %v514 = vpop.f32.mrb[0].mxu0
      %v515 = vadd.f32 0.0, %v514
      %v516 = vpop.f32.mrb[0].mxu0
      %517 = vdwg.mxu0
      %v519 = vsel %vm413, %v416, 0
      %v522 = vsel %vm413, %v417, 0
      %524 = vmatprep.subr.mxu0 0.0
      %525 = vmatpush1.msra.mxu0 %v418
      %526 = vmatprep.subr.mxu0 0.0
      %527 = vmatpush1.msra.mxu0 %v419
      %528 = vmatprep.subr.mxu0 0.0
      %529 = vmatpush1.msra.mxu0 %v420
      %530 = vmatprep.subr.mxu0 0.0
      %531 = vmatpush1.msra.mxu0 %v421
      %532 = vmatprep.subr.mxu0 0.0
      %533 = vmatpush1.msra.mxu0 %v422
      %534 = vmatprep.subr.mxu0 0.0
      %535 = vmatpush1.msra.mxu0 %v423
      %536 = vmatprep.subr.mxu0 0.0
      %537 = vmatpush1.msra.mxu0 %v424
      %538 = vmatprep.subr.mxu0 0.0
      %539 = vmatpush1.msra.mxu0 %v425
      %540 = vmatprep.subr.mxu0 0.0
      %541 = vmatpush1.msra.mxu0 0.0
      %542 = vmatprep.subr.mxu0 0.0
      %543 = vmatpush1.msra.mxu0 0.0
      %544 = vmatprep.subr.mxu0 0.0
      %545 = vmatpush1.msra.mxu0 0.0
      %546 = vmatprep.subr.mxu0 0.0
      %547 = vmatpush1.msra.mxu0 0.0
      %548 = vmatprep.subr.mxu0 0.0
      %549 = vmatpush1.msra.mxu0 0.0
      %550 = vmatprep.subr.mxu0 0.0
      %551 = vmatpush1.msra.mxu0 0.0
      %552 = vmatprep.subr.mxu0 0.0
      %553 = vmatpush1.msra.mxu0 0.0
      %554 = vmatprep.subr.mxu0 0.0
      %555 = vmatpush1.msra.mxu0 0.0
      %556 = vmatprep.subr.mxu0 0.0
      %557 = vmatpush1.msra.mxu0 0.0
      %558 = vmatprep.subr.mxu0 0.0
      %559 = vmatpush1.msra.mxu0 0.0
      %560 = vmatprep.subr.mxu0 0.0
      %561 = vmatpush1.msra.mxu0 0.0
      %562 = vmatprep.subr.mxu0 0.0
      %563 = vmatpush1.msra.mxu0 0.0
      %564 = vmatprep.subr.mxu0 0.0
      %565 = vmatpush1.msra.mxu0 0.0
      %566 = vmatprep.subr.mxu0 0.0
      %567 = vmatpush1.msra.mxu0 0.0
      %568 = vmatprep.subr.mxu0 0.0
      %569 = vmatpush1.msra.mxu0 0.0
      %570 = vmatprep.subr.mxu0 0.0
      %571 = vmatpush1.msra.mxu0 0.0
      %572 = vmatprep.subr.mxu0 0.0
      %573 = vmatpush1.msra.mxu0 0.0
      %574 = vmatprep.subr.mxu0 0.0
      %575 = vmatpush1.msra.mxu0 0.0
      %576 = vmatprep.subr.mxu0 0.0
      %577 = vmatpush1.msra.mxu0 0.0
      %578 = vmatprep.subr.mxu0 0.0
      %579 = vmatpush1.msra.mxu0 0.0
      %580 = vmatprep.subr.mxu0 0.0
      %581 = vmatpush1.msra.mxu0 0.0
      %582 = vmatprep.subr.mxu0 0.0
      %583 = vmatpush1.msra.mxu0 0.0
      %584 = vmatprep.subr.mxu0 0.0
      %585 = vmatpush1.msra.mxu0 0.0
      %586 = vmatprep.subr.mxu0 0.0
      %587 = vmatpush1.msra.mxu0 0.0
      %588 = vmatprep.mubr.f32.mxu0 0.0
      %589 = vmatmul.mubr.f32.gmra.mrb[0].mxu0 %v519
      %v590 = vpop.f32.mrb[0].mxu0
      %v591 = vadd.f32 %v510, %v590
      %v592 = vpop.f32.mrb[0].mxu0
      %593 = vmatprep.mubr.f32.mxu0 0.0
      %594 = vmatmul.mubr.f32.gmra.mrb[0].mxu0 %v522
      %v595 = vpop.f32.mrb[0].mxu0
      %v596 = vadd.f32 %v515, %v595
      %v597 = vpop.f32.mrb[0].mxu0
      %598 = vdwg.mxu0
      %v599 = vld [vmem:[#allocation2 + $0x2] sm:$0xff]
      %v600 = vld [vmem:[#allocation2 + $0xa] sm:$0xff]
      %s601 = scalar_lea.vmem %s1, 128
      %v602 = vld [vmem:[%s601] sm:$0xff]
      %v603 = vld [vmem:[%s601 + $0x8] sm:$0xff]
      %v604 = vld [vmem:[%s601 + $0x10] sm:$0xff]
      %v605 = vld [vmem:[%s601 + $0x18] sm:$0xff]
      %v606 = vld [vmem:[%s601 + $0x20] sm:$0xff]
      %v607 = vld [vmem:[%s601 + $0x28] sm:$0xff]
      %v608 = vld [vmem:[%s601 + $0x30] sm:$0xff]
      %v609 = vld [vmem:[%s601 + $0x38] sm:$0xff]
      %v611 = vsel %vm413, %v599, 0
      %v614 = vsel %vm413, %v600, 0
      %616 = vmatprep.subr.mxu0 0.0
      %617 = vmatpush1.msra.mxu0 %v602
      %618 = vmatprep.subr.mxu0 0.0
      %619 = vmatpush1.msra.mxu0 %v603
      %620 = vmatprep.subr.mxu0 0.0
      %621 = vmatpush1.msra.mxu0 %v604
      %622 = vmatprep.subr.mxu0 0.0
      %623 = vmatpush1.msra.mxu0 %v605
      %624 = vmatprep.subr.mxu0 0.0
      %625 = vmatpush1.msra.mxu0 %v606
      %626 = vmatprep.subr.mxu0 0.0
      %627 = vmatpush1.msra.mxu0 %v607
      %628 = vmatprep.subr.mxu0 0.0
      %629 = vmatpush1.msra.mxu0 %v608
      %630 = vmatprep.subr.mxu0 0.0
      %631 = vmatpush1.msra.mxu0 %v609
      %632 = vmatprep.subr.mxu0 0.0
      %633 = vmatpush1.msra.mxu0 0.0
      %634 = vmatprep.subr.mxu0 0.0
      %635 = vmatpush1.msra.mxu0 0.0
      %636 = vmatprep.subr.mxu0 0.0
      %637 = vmatpush1.msra.mxu0 0.0
      %638 = vmatprep.subr.mxu0 0.0
      %639 = vmatpush1.msra.mxu0 0.0
      %640 = vmatprep.subr.mxu0 0.0
      %641 = vmatpush1.msra.mxu0 0.0
      %642 = vmatprep.subr.mxu0 0.0
      %643 = vmatpush1.msra.mxu0 0.0
      %644 = vmatprep.subr.mxu0 0.0
      %645 = vmatpush1.msra.mxu0 0.0
      %646 = vmatprep.subr.mxu0 0.0
      %647 = vmatpush1.msra.mxu0 0.0
      %648 = vmatprep.subr.mxu0 0.0
      %649 = vmatpush1.msra.mxu0 0.0
      %650 = vmatprep.subr.mxu0 0.0
      %651 = vmatpush1.msra.mxu0 0.0
      %652 = vmatprep.subr.mxu0 0.0
      %653 = vmatpush1.msra.mxu0 0.0
      %654 = vmatprep.subr.mxu0 0.0
      %655 = vmatpush1.msra.mxu0 0.0
      %656 = vmatprep.subr.mxu0 0.0
      %657 = vmatpush1.msra.mxu0 0.0
      %658 = vmatprep.subr.mxu0 0.0
      %659 = vmatpush1.msra.mxu0 0.0
      %660 = vmatprep.subr.mxu0 0.0
      %661 = vmatpush1.msra.mxu0 0.0
      %662 = vmatprep.subr.mxu0 0.0
      %663 = vmatpush1.msra.mxu0 0.0
      %664 = vmatprep.subr.mxu0 0.0
      %665 = vmatpush1.msra.mxu0 0.0
      %666 = vmatprep.subr.mxu0 0.0
      %667 = vmatpush1.msra.mxu0 0.0
      %668 = vmatprep.subr.mxu0 0.0
      %669 = vmatpush1.msra.mxu0 0.0
      %670 = vmatprep.subr.mxu0 0.0
      %671 = vmatpush1.msra.mxu0 0.0
      %672 = vmatprep.subr.mxu0 0.0
      %673 = vmatpush1.msra.mxu0 0.0
      %674 = vmatprep.subr.mxu0 0.0
      %675 = vmatpush1.msra.mxu0 0.0
      %676 = vmatprep.subr.mxu0 0.0
      %677 = vmatpush1.msra.mxu0 0.0
      %678 = vmatprep.subr.mxu0 0.0
      %679 = vmatpush1.msra.mxu0 0.0
      %680 = vmatprep.mubr.f32.mxu0 0.0
      %681 = vmatmul.mubr.f32.gmra.mrb[0].mxu0 %v611
      %v682 = vpop.f32.mrb[0].mxu0
      %v683 = vadd.f32 0.0, %v682
      %v684 = vpop.f32.mrb[0].mxu0
      %685 = vmatprep.mubr.f32.mxu0 0.0
      %686 = vmatmul.mubr.f32.gmra.mrb[0].mxu0 %v614
      %v687 = vpop.f32.mrb[0].mxu0
      %v688 = vadd.f32 0.0, %v687
      %v689 = vpop.f32.mrb[0].mxu0
      %690 = vdwg.mxu0
      %v691 = vadd.f32 %v591, %v683
      %v692 = vadd.f32 %v596, %v688
      %v693 = vld [vmem:[%s5] sm:$0x1]
      %v695 = vlaneseq
      %v696 = vshrl.u32 %v695, 7
      %v697 = vsub.s32 0, %v696
      %v698 = vrot.slane %v693, %v697
      %v700 = vmul.f32 %v691, %v698
      %v701 = vmul.f32 %v692, %v698
      %v702 = vld [vmem:[%s6] sm:$0x1]
      %v704 = vlaneseq
      %v705 = vshrl.u32 %v704, 7
      %v706 = vsub.s32 0, %v705
      %v707 = vrot.slane %v702, %v706
      %v709 = vadd.f32 %v700, %v707
      %v710 = vadd.f32 %v701, %v707
      %v711 = vmax.f32 %v709, 0.0
      %v712 = vmax.f32 %v710, 0.0
      %713 = vst [vmem:[#allocation3] sm:$0x1] 0.0
      %714 = vst [vmem:[#allocation3 + $0x11] sm:$0x1] 0.0
      %715 = vst [vmem:[#allocation3 + $0x1] sm:$0xff] %v711
      %716 = vst [vmem:[#allocation3 + $0x9] sm:$0xff] %v712
      %v717 = vld [vmem:[#allocation3] sm:$0xff]
      %v718 = vld [vmem:[#allocation3 + $0x8] sm:$0xff]
      %v719 = vld [vmem:[%s4] sm:$0xff]
      %v720 = vld [vmem:[%s4 + $0x8] sm:$0xff]
      %v721 = vld [vmem:[%s4 + $0x10] sm:$0xff]
      %v722 = vld [vmem:[%s4 + $0x18] sm:$0xff]
      %v723 = vld [vmem:[%s4 + $0x20] sm:$0xff]
      %v724 = vld [vmem:[%s4 + $0x28] sm:$0xff]
      %v725 = vld [vmem:[%s4 + $0x30] sm:$0xff]
      %v726 = vld [vmem:[%s4 + $0x38] sm:$0xff]
      %v727 = vld [vmem:[%s4 + $0x40] sm:$0xff]
      %v728 = vld [vmem:[%s4 + $0x48] sm:$0xff]
      %v729 = vld [vmem:[%s4 + $0x50] sm:$0xff]
      %v730 = vld [vmem:[%s4 + $0x58] sm:$0xff]
      %v731 = vld [vmem:[%s4 + $0x60] sm:$0xff]
      %v732 = vld [vmem:[%s4 + $0x68] sm:$0xff]
      %v733 = vld [vmem:[%s4 + $0x70] sm:$0xff]
      %v734 = vld [vmem:[%s4 + $0x78] sm:$0xff]
      %735 = vmatprep.subr.mxu0 0.0
      %736 = vmatpush1.msra.mxu0 %v719
      %737 = vmatprep.subr.mxu0 0.0
      %738 = vmatpush1.msra.mxu0 %v720
      %739 = vmatprep.subr.mxu0 0.0
      %740 = vmatpush1.msra.mxu0 %v721
      %741 = vmatprep.subr.mxu0 0.0
      %742 = vmatpush1.msra.mxu0 %v722
      %743 = vmatprep.subr.mxu0 0.0
      %744 = vmatpush1.msra.mxu0 %v723
      %745 = vmatprep.subr.mxu0 0.0
      %746 = vmatpush1.msra.mxu0 %v724
      %747 = vmatprep.subr.mxu0 0.0
      %748 = vmatpush1.msra.mxu0 %v725
      %749 = vmatprep.subr.mxu0 0.0
      %750 = vmatpush1.msra.mxu0 %v726
      %751 = vmatprep.subr.mxu0 0.0
      %752 = vmatpush1.msra.mxu0 %v727
      %753 = vmatprep.subr.mxu0 0.0
      %754 = vmatpush1.msra.mxu0 %v728
      %755 = vmatprep.subr.mxu0 0.0
      %756 = vmatpush1.msra.mxu0 %v729
      %757 = vmatprep.subr.mxu0 0.0
      %758 = vmatpush1.msra.mxu0 %v730
      %759 = vmatprep.subr.mxu0 0.0
      %760 = vmatpush1.msra.mxu0 %v731
      %761 = vmatprep.subr.mxu0 0.0
      %762 = vmatpush1.msra.mxu0 %v732
      %763 = vmatprep.subr.mxu0 0.0
      %764 = vmatpush1.msra.mxu0 %v733
      %765 = vmatprep.subr.mxu0 0.0
      %766 = vmatpush1.msra.mxu0 %v734
      %767 = vmatprep.subr.mxu0 0.0
      %768 = vmatpush1.msra.mxu0 0.0
      %769 = vmatprep.subr.mxu0 0.0
      %770 = vmatpush1.msra.mxu0 0.0
      %771 = vmatprep.subr.mxu0 0.0
      %772 = vmatpush1.msra.mxu0 0.0
      %773 = vmatprep.subr.mxu0 0.0
      %774 = vmatpush1.msra.mxu0 0.0
      %775 = vmatprep.subr.mxu0 0.0
      %776 = vmatpush1.msra.mxu0 0.0
      %777 = vmatprep.subr.mxu0 0.0
      %778 = vmatpush1.msra.mxu0 0.0
      %779 = vmatprep.subr.mxu0 0.0
      %780 = vmatpush1.msra.mxu0 0.0
      %781 = vmatprep.subr.mxu0 0.0
      %782 = vmatpush1.msra.mxu0 0.0
      %783 = vmatprep.subr.mxu0 0.0
      %784 = vmatpush1.msra.mxu0 0.0
      %785 = vmatprep.subr.mxu0 0.0
      %786 = vmatpush1.msra.mxu0 0.0
      %787 = vmatprep.subr.mxu0 0.0
      %788 = vmatpush1.msra.mxu0 0.0
      %789 = vmatprep.subr.mxu0 0.0
      %790 = vmatpush1.msra.mxu0 0.0
      %791 = vmatprep.subr.mxu0 0.0
      %792 = vmatpush1.msra.mxu0 0.0
      %793 = vmatprep.subr.mxu0 0.0
      %794 = vmatpush1.msra.mxu0 0.0
      %795 = vmatprep.subr.mxu0 0.0
      %796 = vmatpush1.msra.mxu0 0.0
      %797 = vmatprep.subr.mxu0 0.0
      %798 = vmatpush1.msra.mxu0 0.0
      %799 = vmatprep.mubr.f32.mxu0 0.0
      %800 = vmatmul.mubr.f32.gmra.mrb[0].mxu0 %v717
      %v801 = vpop.f32.mrb[0].mxu0
      %v802 = vadd.f32 0.0, %v801
      %v803 = vpop.f32.mrb[0].mxu0
      %804 = vmatprep.mubr.f32.mxu0 0.0
      %805 = vmatmul.mubr.f32.gmra.mrb[0].mxu0 %v718
      %v806 = vpop.f32.mrb[0].mxu0
      %v807 = vadd.f32 0.0, %v806
      %v808 = vpop.f32.mrb[0].mxu0
      %809 = vdwg.mxu0
      %v811 = vsel %vm413, %v380, 0
      %v814 = vsel %vm413, %v381, 0
      %816 = vmatprep.subr.mxu0 0.0
      %817 = vmatpush1.msra.mxu0 %v382
      %818 = vmatprep.subr.mxu0 0.0
      %819 = vmatpush1.msra.mxu0 %v383
      %820 = vmatprep.subr.mxu0 0.0
      %821 = vmatpush1.msra.mxu0 %v384
      %822 = vmatprep.subr.mxu0 0.0
      %823 = vmatpush1.msra.mxu0 %v385
      %824 = vmatprep.subr.mxu0 0.0
      %825 = vmatpush1.msra.mxu0 %v386
      %826 = vmatprep.subr.mxu0 0.0
      %827 = vmatpush1.msra.mxu0 %v387
      %828 = vmatprep.subr.mxu0 0.0
      %829 = vmatpush1.msra.mxu0 %v388
      %830 = vmatprep.subr.mxu0 0.0
      %831 = vmatpush1.msra.mxu0 %v389
      %832 = vmatprep.subr.mxu0 0.0
      %833 = vmatpush1.msra.mxu0 0.0
      %834 = vmatprep.subr.mxu0 0.0
      %835 = vmatpush1.msra.mxu0 0.0
      %836 = vmatprep.subr.mxu0 0.0
      %837 = vmatpush1.msra.mxu0 0.0
      %838 = vmatprep.subr.mxu0 0.0
      %839 = vmatpush1.msra.mxu0 0.0
      %840 = vmatprep.subr.mxu0 0.0
      %841 = vmatpush1.msra.mxu0 0.0
      %842 = vmatprep.subr.mxu0 0.0
      %843 = vmatpush1.msra.mxu0 0.0
      %844 = vmatprep.subr.mxu0 0.0
      %845 = vmatpush1.msra.mxu0 0.0
      %846 = vmatprep.subr.mxu0 0.0
      %847 = vmatpush1.msra.mxu0 0.0
      %848 = vmatprep.subr.mxu0 0.0
      %849 = vmatpush1.msra.mxu0 0.0
      %850 = vmatprep.subr.mxu0 0.0
      %851 = vmatpush1.msra.mxu0 0.0
      %852 = vmatprep.subr.mxu0 0.0
      %853 = vmatpush1.msra.mxu0 0.0
      %854 = vmatprep.subr.mxu0 0.0
      %855 = vmatpush1.msra.mxu0 0.0
      %856 = vmatprep.subr.mxu0 0.0
      %857 = vmatpush1.msra.mxu0 0.0
      %858 = vmatprep.subr.mxu0 0.0
      %859 = vmatpush1.msra.mxu0 0.0
      %860 = vmatprep.subr.mxu0 0.0
      %861 = vmatpush1.msra.mxu0 0.0
      %862 = vmatprep.subr.mxu0 0.0
      %863 = vmatpush1.msra.mxu0 0.0
      %864 = vmatprep.subr.mxu0 0.0
      %865 = vmatpush1.msra.mxu0 0.0
      %866 = vmatprep.subr.mxu0 0.0
      %867 = vmatpush1.msra.mxu0 0.0
      %868 = vmatprep.subr.mxu0 0.0
      %869 = vmatpush1.msra.mxu0 0.0
      %870 = vmatprep.subr.mxu0 0.0
      %871 = vmatpush1.msra.mxu0 0.0
      %872 = vmatprep.subr.mxu0 0.0
      %873 = vmatpush1.msra.mxu0 0.0
      %874 = vmatprep.subr.mxu0 0.0
      %875 = vmatpush1.msra.mxu0 0.0
      %876 = vmatprep.subr.mxu0 0.0
      %877 = vmatpush1.msra.mxu0 0.0
      %878 = vmatprep.subr.mxu0 0.0
      %879 = vmatpush1.msra.mxu0 0.0
      %880 = vmatprep.mubr.f32.mxu0 0.0
      %881 = vmatmul.mubr.f32.gmra.mrb[0].mxu0 %v811
      %v882 = vpop.f32.mrb[0].mxu0
      %v883 = vadd.f32 %v802, %v882
      %v884 = vpop.f32.mrb[0].mxu0
      %885 = vmatprep.mubr.f32.mxu0 0.0
      %886 = vmatmul.mubr.f32.gmra.mrb[0].mxu0 %v814
      %v887 = vpop.f32.mrb[0].mxu0
      %v888 = vadd.f32 %v807, %v887
      %v889 = vpop.f32.mrb[0].mxu0
      %890 = vdwg.mxu0
      %v891 = vld [vmem:[#allocation3 + $0x1] sm:$0xff]
      %v892 = vld [vmem:[#allocation3 + $0x9] sm:$0xff]
      %s893 = scalar_lea.vmem %s4, 128
      %v894 = vld [vmem:[%s893] sm:$0xff]
      %v895 = vld [vmem:[%s893 + $0x8] sm:$0xff]
      %v896 = vld [vmem:[%s893 + $0x10] sm:$0xff]
      %v897 = vld [vmem:[%s893 + $0x18] sm:$0xff]
      %v898 = vld [vmem:[%s893 + $0x20] sm:$0xff]
      %v899 = vld [vmem:[%s893 + $0x28] sm:$0xff]
      %v900 = vld [vmem:[%s893 + $0x30] sm:$0xff]
      %v901 = vld [vmem:[%s893 + $0x38] sm:$0xff]
      %v902 = vld [vmem:[%s893 + $0x40] sm:$0xff]
      %v903 = vld [vmem:[%s893 + $0x48] sm:$0xff]
      %v904 = vld [vmem:[%s893 + $0x50] sm:$0xff]
      %v905 = vld [vmem:[%s893 + $0x58] sm:$0xff]
      %v906 = vld [vmem:[%s893 + $0x60] sm:$0xff]
      %v907 = vld [vmem:[%s893 + $0x68] sm:$0xff]
      %v908 = vld [vmem:[%s893 + $0x70] sm:$0xff]
      %v909 = vld [vmem:[%s893 + $0x78] sm:$0xff]
      %910 = vmatprep.subr.mxu0 0.0
      %911 = vmatpush1.msra.mxu0 %v894
      %912 = vmatprep.subr.mxu0 0.0
      %913 = vmatpush1.msra.mxu0 %v895
      %914 = vmatprep.subr.mxu0 0.0
      %915 = vmatpush1.msra.mxu0 %v896
      %916 = vmatprep.subr.mxu0 0.0
      %917 = vmatpush1.msra.mxu0 %v897
      %918 = vmatprep.subr.mxu0 0.0
      %919 = vmatpush1.msra.mxu0 %v898
      %920 = vmatprep.subr.mxu0 0.0
      %921 = vmatpush1.msra.mxu0 %v899
      %922 = vmatprep.subr.mxu0 0.0
      %923 = vmatpush1.msra.mxu0 %v900
      %924 = vmatprep.subr.mxu0 0.0
      %925 = vmatpush1.msra.mxu0 %v901
      %926 = vmatprep.subr.mxu0 0.0
      %927 = vmatpush1.msra.mxu0 %v902
      %928 = vmatprep.subr.mxu0 0.0
      %929 = vmatpush1.msra.mxu0 %v903
      %930 = vmatprep.subr.mxu0 0.0
      %931 = vmatpush1.msra.mxu0 %v904
      %932 = vmatprep.subr.mxu0 0.0
      %933 = vmatpush1.msra.mxu0 %v905
      %934 = vmatprep.subr.mxu0 0.0
      %935 = vmatpush1.msra.mxu0 %v906
      %936 = vmatprep.subr.mxu0 0.0
      %937 = vmatpush1.msra.mxu0 %v907
      %938 = vmatprep.subr.mxu0 0.0
      %939 = vmatpush1.msra.mxu0 %v908
      %940 = vmatprep.subr.mxu0 0.0
      %941 = vmatpush1.msra.mxu0 %v909
      %942 = vmatprep.subr.mxu0 0.0
      %943 = vmatpush1.msra.mxu0 0.0
      %944 = vmatprep.subr.mxu0 0.0
      %945 = vmatpush1.msra.mxu0 0.0
      %946 = vmatprep.subr.mxu0 0.0
      %947 = vmatpush1.msra.mxu0 0.0
      %948 = vmatprep.subr.mxu0 0.0
      %949 = vmatpush1.msra.mxu0 0.0
      %950 = vmatprep.subr.mxu0 0.0
      %951 = vmatpush1.msra.mxu0 0.0
      %952 = vmatprep.subr.mxu0 0.0
      %953 = vmatpush1.msra.mxu0 0.0
      %954 = vmatprep.subr.mxu0 0.0
      %955 = vmatpush1.msra.mxu0 0.0
      %956 = vmatprep.subr.mxu0 0.0
      %957 = vmatpush1.msra.mxu0 0.0
      %958 = vmatprep.subr.mxu0 0.0
      %959 = vmatpush1.msra.mxu0 0.0
      %960 = vmatprep.subr.mxu0 0.0
      %961 = vmatpush1.msra.mxu0 0.0
      %962 = vmatprep.subr.mxu0 0.0
      %963 = vmatpush1.msra.mxu0 0.0
      %964 = vmatprep.subr.mxu0 0.0
      %965 = vmatpush1.msra.mxu0 0.0
      %966 = vmatprep.subr.mxu0 0.0
      %967 = vmatpush1.msra.mxu0 0.0
      %968 = vmatprep.subr.mxu0 0.0
      %969 = vmatpush1.msra.mxu0 0.0
      %970 = vmatprep.subr.mxu0 0.0
      %971 = vmatpush1.msra.mxu0 0.0
      %972 = vmatprep.subr.mxu0 0.0
      %973 = vmatpush1.msra.mxu0 0.0
      %974 = vmatprep.mubr.f32.mxu0 0.0
      %975 = vmatmul.mubr.f32.gmra.mrb[0].mxu0 %v891
      %v976 = vpop.f32.mrb[0].mxu0
      %v977 = vadd.f32 0.0, %v976
      %v978 = vpop.f32.mrb[0].mxu0
      %979 = vmatprep.mubr.f32.mxu0 0.0
      %980 = vmatmul.mubr.f32.gmra.mrb[0].mxu0 %v892
      %v981 = vpop.f32.mrb[0].mxu0
      %v982 = vadd.f32 0.0, %v981
      %v983 = vpop.f32.mrb[0].mxu0
      %984 = vdwg.mxu0
      %v985 = vadd.f32 %v883, %v977
      %v986 = vadd.f32 %v888, %v982
      %v987 = vld [vmem:[#allocation3 + $0x2] sm:$0xff]
      %v988 = vld [vmem:[#allocation3 + $0xa] sm:$0xff]
      %s989 = scalar_lea.vmem %s4, 256
      %v990 = vld [vmem:[%s989] sm:$0xff]
      %v991 = vld [vmem:[%s989 + $0x8] sm:$0xff]
      %v992 = vld [vmem:[%s989 + $0x10] sm:$0xff]
      %v993 = vld [vmem:[%s989 + $0x18] sm:$0xff]
      %v994 = vld [vmem:[%s989 + $0x20] sm:$0xff]
      %v995 = vld [vmem:[%s989 + $0x28] sm:$0xff]
      %v996 = vld [vmem:[%s989 + $0x30] sm:$0xff]
      %v997 = vld [vmem:[%s989 + $0x38] sm:$0xff]
      %v998 = vld [vmem:[%s989 + $0x40] sm:$0xff]
      %v999 = vld [vmem:[%s989 + $0x48] sm:$0xff]
      %v1000 = vld [vmem:[%s989 + $0x50] sm:$0xff]
      %v1001 = vld [vmem:[%s989 + $0x58] sm:$0xff]
      %v1002 = vld [vmem:[%s989 + $0x60] sm:$0xff]
      %v1003 = vld [vmem:[%s989 + $0x68] sm:$0xff]
      %v1004 = vld [vmem:[%s989 + $0x70] sm:$0xff]
      %v1005 = vld [vmem:[%s989 + $0x78] sm:$0xff]
      %1006 = vmatprep.subr.mxu0 0.0
      %1007 = vmatpush1.msra.mxu0 %v990
      %1008 = vmatprep.subr.mxu0 0.0
      %1009 = vmatpush1.msra.mxu0 %v991
      %1010 = vmatprep.subr.mxu0 0.0
      %1011 = vmatpush1.msra.mxu0 %v992
      %1012 = vmatprep.subr.mxu0 0.0
      %1013 = vmatpush1.msra.mxu0 %v993
      %1014 = vmatprep.subr.mxu0 0.0
      %1015 = vmatpush1.msra.mxu0 %v994
      %1016 = vmatprep.subr.mxu0 0.0
      %1017 = vmatpush1.msra.mxu0 %v995
      %1018 = vmatprep.subr.mxu0 0.0
      %1019 = vmatpush1.msra.mxu0 %v996
      %1020 = vmatprep.subr.mxu0 0.0
      %1021 = vmatpush1.msra.mxu0 %v997
      %1022 = vmatprep.subr.mxu0 0.0
      %1023 = vmatpush1.msra.mxu0 %v998
      %1024 = vmatprep.subr.mxu0 0.0
      %1025 = vmatpush1.msra.mxu0 %v999
      %1026 = vmatprep.subr.mxu0 0.0
      %1027 = vmatpush1.msra.mxu0 %v1000
      %1028 = vmatprep.subr.mxu0 0.0
      %1029 = vmatpush1.msra.mxu0 %v1001
      %1030 = vmatprep.subr.mxu0 0.0
      %1031 = vmatpush1.msra.mxu0 %v1002
      %1032 = vmatprep.subr.mxu0 0.0
      %1033 = vmatpush1.msra.mxu0 %v1003
      %1034 = vmatprep.subr.mxu0 0.0
      %1035 = vmatpush1.msra.mxu0 %v1004
      %1036 = vmatprep.subr.mxu0 0.0
      %1037 = vmatpush1.msra.mxu0 %v1005
      %1038 = vmatprep.subr.mxu0 0.0
      %1039 = vmatpush1.msra.mxu0 0.0
      %1040 = vmatprep.subr.mxu0 0.0
      %1041 = vmatpush1.msra.mxu0 0.0
      %1042 = vmatprep.subr.mxu0 0.0
      %1043 = vmatpush1.msra.mxu0 0.0
      %1044 = vmatprep.subr.mxu0 0.0
      %1045 = vmatpush1.msra.mxu0 0.0
      %1046 = vmatprep.subr.mxu0 0.0
      %1047 = vmatpush1.msra.mxu0 0.0
      %1048 = vmatprep.subr.mxu0 0.0
      %1049 = vmatpush1.msra.mxu0 0.0
      %1050 = vmatprep.subr.mxu0 0.0
      %1051 = vmatpush1.msra.mxu0 0.0
      %1052 = vmatprep.subr.mxu0 0.0
      %1053 = vmatpush1.msra.mxu0 0.0
      %1054 = vmatprep.subr.mxu0 0.0
      %1055 = vmatpush1.msra.mxu0 0.0
      %1056 = vmatprep.subr.mxu0 0.0
      %1057 = vmatpush1.msra.mxu0 0.0
      %1058 = vmatprep.subr.mxu0 0.0
      %1059 = vmatpush1.msra.mxu0 0.0
      %1060 = vmatprep.subr.mxu0 0.0
      %1061 = vmatpush1.msra.mxu0 0.0
      %1062 = vmatprep.subr.mxu0 0.0
      %1063 = vmatpush1.msra.mxu0 0.0
      %1064 = vmatprep.subr.mxu0 0.0
      %1065 = vmatpush1.msra.mxu0 0.0
      %1066 = vmatprep.subr.mxu0 0.0
      %1067 = vmatpush1.msra.mxu0 0.0
      %1068 = vmatprep.subr.mxu0 0.0
      %1069 = vmatpush1.msra.mxu0 0.0
      %1070 = vmatprep.mubr.f32.mxu0 0.0
      %1071 = vmatmul.mubr.f32.gmra.mrb[0].mxu0 %v987
      %v1072 = vpop.f32.mrb[0].mxu0
      %v1073 = vadd.f32 0.0, %v1072
      %v1074 = vpop.f32.mrb[0].mxu0
      %1075 = vmatprep.mubr.f32.mxu0 0.0
      %1076 = vmatmul.mubr.f32.gmra.mrb[0].mxu0 %v988
      %v1077 = vpop.f32.mrb[0].mxu0
      %v1078 = vadd.f32 0.0, %v1077
      %v1079 = vpop.f32.mrb[0].mxu0
      %1080 = vdwg.mxu0
      %v1081 = vadd.f32 %v985, %v1073
      %v1082 = vadd.f32 %v986, %v1078
      %1083 = vst [vmem:[%s359] sm:$0xff] %v1081
      %1084 = vst [vmem:[%s359 + $0x8] sm:$0xff] %v1082
      %p1085 = scmp.lt.s32.totalorder %s21, 1
      %s1086 = scalar_select %p1085, %s21, 1
      %s1087 = smul.addr %s1086, 2
      %s1088 = smul.addr %s1087, 8
      %s1089 = scalar_lea.vmem %s10, %s1088
      // Predicated region
      $region61: #{_lambda_.1} parent=59 // pred_check
        %p1090 = pneg %p254
      $region62: #{_lambda_.1} parent=59 // pred_check_branch
        %1092 = sbr.rel (%p1090) target = $region64
      $region63: #{_lambda_.1} parent=59 // pred_region
        _
      $region64: #{_lambda_.1} parent=59 // pred_fallthru
        _
    $region60: #{_lambda_.1} parent=5 // pred_fallthru
      _
    %p1093 = scmp.le.s32.totalorder 2, %s16
    // Predicated region
    $region65: #{_lambda_.1} parent=5 // pred_check
      %p1094 = pneg %p1093
    $region66: #{_lambda_.1} parent=5 // pred_check_branch
      %1096 = sbr.rel (%p1094) target = $region68
    $region67: #{_lambda_.1} parent=5 // pred_region
      %s1097 = ssub.s32 %s16, 2
      // Predicated region
      $region69: #{_lambda_.1} parent=67 // pred_check
        %p1098 = pneg %p260
      $region70: #{_lambda_.1} parent=67 // pred_check_branch
        %1100 = sbr.rel (%p1098) target = $region72
      $region71: #{_lambda_.1} parent=67 // pred_region
        %p1101 = scmp.lt.s32.totalorder %s22, 1
        %s1102 = scalar_select %p1101, %s22, 1
        %s1103 = smul.addr %s1102, 2
        %s1104 = smul.addr %s1103, 8
        %s1105 = scalar_lea.vmem %s10, %s1104
      $region72: #{_lambda_.1} parent=67 // pred_fallthru
        _
    $region68: #{_lambda_.1} parent=5 // pred_fallthru
      _
  $region6: #{_lambda_.1} parent=0 // loop_footer
    %s20 = sadd.s32 1, %s16
  $region7: #{_lambda_.1} parent=0 // loop_footer_branch
    %15 = sbr.rel target = $region3
  $region8: #{_lambda_.1} parent=0 // loop_exit
    _

</llo_original>
